<compile_context>
chip_gen: v6e
topology: v6e:2x2x1
jax: 0.10.0
libtpu: 0.0.40
codegen_flags: <defaults>
</compile_context>

<pallas_src>
import jax
import jax.numpy as jnp
from jax.experimental import pallas as pl
from jax.experimental.pallas import tpu as pltpu


def _make_kernel(label_smoothing, num_classes, hw, tile):
    # Compile-time *Python float* constants. (Do NOT create jnp arrays here: Pallas kernels
    # may not close over device-array constants -> "captures constants" error.)
    on_val = float(1.0 - label_smoothing + label_smoothing / num_classes)
    off_val = float(label_smoothing / num_classes)

    def kernel(out_ref, lab_ref, smooth_ref, loss_ref):
        # out_ref:    VMEM (C, T)    native dtype  logits tile (one batch elem, T pixels)
        # lab_ref:    VMEM (1, T)    int32         labels tile
        # smooth_ref: VMEM (C, T)    native dtype  smoothed one-hot labels (output)
        # loss_ref:   VMEM (8, 128)  float32       per-(batch, tile) loss partial (replicated)
        x = out_ref[...].astype(jnp.float32)       # upcast in-kernel; HBM read stays native
        labels = lab_ref[...]                      # (1, T) int32
        C, T = x.shape

        # Smoothed one-hot over the channel axis via a single select (no f32 one-hot temp).
        ch = jax.lax.broadcasted_iota(jnp.int32, (C, T), 0)
        smooth = jnp.where(ch == labels, on_val, off_val).astype(jnp.float32)
        smooth_ref[...] = smooth.astype(smooth_ref.dtype)

        # Channel log-softmax without materializing logp:
        #   sum_c(-smooth*logp) = (sum_c smooth)*lse - sum_c(smooth*z),  z = x - max_c(x)
        m = jnp.max(x, axis=0, keepdims=True)                        # (1, T)
        z = x - m
        lse = jnp.log(jnp.sum(jnp.exp(z), axis=0, keepdims=True))    # (1, T)
        dot = jnp.sum(smooth * z, axis=0, keepdims=True)             # (1, T)
        ssum = jnp.sum(smooth, axis=0, keepdims=True)                # (1, T); ==1 for valid labels

        # Mask the padded tail of the last pixel tile (grid uses cdiv, not exact divisors).
        start = pl.program_id(1) * tile
        pix = jax.lax.broadcasted_iota(jnp.int32, (1, T), 1) + start
        contrib = jnp.where(pix < hw, ssum * lse - dot, 0.0)

        # f32 tree-ish lane reduce per tile; cross-tile sum happens on the partials outside.
        tile_loss = jnp.sum(contrib)
        loss_ref[...] = jnp.full(loss_ref.shape, tile_loss, dtype=jnp.float32)

    return kernel


def _vmem_capacity_bytes():
    """Best-effort per-core VMEM capacity; fall back to the smallest (v7x: 64 MiB)."""
    try:
        return int(pltpu.get_tpu_info().vmem_capacity_bytes)
    except Exception:
        return 64 * 1024 * 1024


def _tile_and_vmem(hw, c, n):
    """Pick pixel-tile size T (multiple of 128, no divisor requirement) and the VMEM limit.

    Budgets are generation-aware: the f32 footprint of one (C, T) tile is ~8 MiB on
    128-MiB chips (v5e/v6e) and ~4 MiB on 64-MiB chips (v7x / unknown). With double-buffered
    in/out blocks plus in-kernel f32/i32 temporaries the working set is roughly 10x that
    budget, which stays inside the corresponding vmem_limit with headroom.
    """
    cap = _vmem_capacity_bytes()
    if cap >= 100 * 1024 * 1024:              # v5e / v6e: 128 MiB per TensorCore
        tile_budget = 8 * 1024 * 1024
        vmem_limit = 104 * 1024 * 1024
    else:                                      # v7x (or undetected): 64 MiB per TensorCore
        tile_budget = 4 * 1024 * 1024
        vmem_limit = 56 * 1024 * 1024

    lanes = pl.cdiv(hw, 128) * 128                       # HW rounded up to whole lanes
    max_t = max(128, (tile_budget // (4 * c)) // 128 * 128)
    t = min(max_t, lanes)
    # Keep at least 2 grid steps total so v7x's two TensorCores both get work.
    if n * pl.cdiv(hw, t) < 2 and lanes > 128:
        t = max(128, pl.cdiv(pl.cdiv(hw, 2), 128) * 128)
    return t, vmem_limit


def celoss_with_ls_label(outputs, labels, label_smoothing, num_classes):
    """Matches CELossWithLS_Label.forward.

    outputs: (N, C, H, W) float (any float dtype; upcast happens in-kernel),
    labels:  (N, H, W) integer, label_smoothing: static python float.
    Returns (scalar f32 loss, smooth_oh_labels (N, C, H, W) in outputs.dtype).
    """
    N, C, H, W = outputs.shape
    assert C == num_classes
    HW = H * W

    x = outputs.reshape(N, C, HW)                      # no wrapper-side f32 cast of logits
    lab = labels.astype(jnp.int32).reshape(N, 1, HW)

    T, vmem_limit = _tile_and_vmem(HW, C, N)
    num_tiles = pl.cdiv(HW, T)

    kernel = _make_kernel(float(label_smoothing), int(num_classes), HW, T)

    smooth_flat, loss_parts = pl.pallas_call(
        kernel,
        grid=(N, num_tiles),
        in_specs=[
            pl.BlockSpec((None, C, T), lambda b, t: (b, 0, t)),             # logits tile
            pl.BlockSpec((None, 1, T), lambda b, t: (b, 0, t)),             # labels tile
        ],
        out_specs=(
            pl.BlockSpec((None, C, T), lambda b, t: (b, 0, t)),             # smoothed labels
            pl.BlockSpec((None, None, 8, 128), lambda b, t: (b, t, 0, 0)),  # loss partial
        ),
        out_shape=(
            jax.ShapeDtypeStruct((N, C, HW), outputs.dtype),   # native dtype: halves HBM
            jax.ShapeDtypeStruct((N, num_tiles, 8, 128), jnp.float32),  # writes for bf16 in
        ),
        compiler_params=pltpu.CompilerParams(
            dimension_semantics=("parallel", "parallel"),   # both axes TC-shardable (v7x)
            vmem_limit_bytes=vmem_limit,
        ),
    )(x, lab)

    # Final tiny reduction: sum of per-(batch, tile) partials, /(N*H*W) == torch .mean().
    loss = loss_parts[:, :, 0, 0].sum() / (N * HW)
    smooth = smooth_flat.reshape(N, C, H, W)
    return loss, smooth


def _reference(outputs, labels, label_smoothing, num_classes):
    oh = jax.nn.one_hot(labels, num_classes, dtype=jnp.float32)      # (N, H, W, C)
    oh = jnp.transpose(oh, (0, 3, 1, 2))                             # (N, C, H, W)
    smooth = oh * (1.0 - label_smoothing) + label_smoothing / num_classes
    logp = jax.nn.log_softmax(outputs.astype(jnp.float32), axis=1)
    loss = (-smooth * logp).sum(axis=1).mean()
    return loss, smooth


if __name__ == "__main__":
    key = jax.random.PRNGKey(0)
    k1, k2 = jax.random.split(key)

    N, C, H, W = 2, 4, 16, 16
    num_classes = C
    label_smoothing = 0.1

    outputs = jax.random.normal(k1, (N, C, H, W), dtype=jnp.float32)
    labels = jax.random.randint(k2, (N, H, W), 0, num_classes, dtype=jnp.int32)

    loss, smooth = celoss_with_ls_label(outputs, labels, label_smoothing, num_classes)
    loss = jax.block_until_ready(loss)
    smooth = jax.block_until_ready(smooth)

    ref_loss, ref_smooth = _reference(outputs, labels, label_smoothing, num_classes)
    assert jnp.allclose(loss, ref_loss, atol=2e-5, rtol=2e-5), (loss, ref_loss)
    assert jnp.allclose(smooth.astype(jnp.float32), ref_smooth, atol=1e-6), "smooth mismatch"

    print("KERNEL_OK")
</pallas_src>

<mosaic_0001>
module attributes {stable_mosaic.version = 11 : i64} {
  func.func @kernel(%arg0: i32, %arg1: i32, %arg2: memref<1x4x256xf32, #tpu.memory_space<vmem>>, %arg3: memref<1x1x256xi32, #tpu.memory_space<vmem>>, %arg4: memref<1x4x256xf32, #tpu.memory_space<vmem>>, %arg5: memref<1x1x8x128xf32, #tpu.memory_space<vmem>>) attributes {dimension_semantics = [#tpu.dimension_semantics<parallel>, #tpu.dimension_semantics<parallel>], iteration_bounds = array<i64: 2, 1>, scalar_prefetch = 0 : i64, scratch_operands = 0 : i64, tpu.core_type = #tpu.core_type<tc>, window_params = [{transform_indices = @transform_0, window_bounds = array<i64: 1, 4, 256>}, {transform_indices = @transform_1, window_bounds = array<i64: 1, 1, 256>}, {transform_indices = @transform_2, window_bounds = array<i64: 1, 4, 256>}, {transform_indices = @transform_3, window_bounds = array<i64: 1, 1, 8, 128>}]} {
    %c0 = arith.constant 0 : index
    %c0_0 = arith.constant 0 : index
    %c0_1 = arith.constant 0 : index
    %0 = vector.load %arg2[%c0, %c0_0, %c0_1] : memref<1x4x256xf32, #tpu.memory_space<vmem>>, vector<1x4x256xf32>
    %1 = vector.shape_cast %0 : vector<1x4x256xf32> to vector<4x256xf32>
    %c0_2 = arith.constant 0 : index
    %c0_3 = arith.constant 0 : index
    %c0_4 = arith.constant 0 : index
    %2 = vector.load %arg3[%c0_2, %c0_3, %c0_4] : memref<1x1x256xi32, #tpu.memory_space<vmem>>, vector<1x1x256xi32>
    %3 = vector.shape_cast %2 : vector<1x1x256xi32> to vector<1x256xi32>
    %4 = tpu.iota {dimensions = array<i32: 0>} : vector<4x256xi32>
    %5 = vector.broadcast %3 : vector<1x256xi32> to vector<4x256xi32>
    %6 = arith.cmpi eq, %4, %5 : vector<4x256xi32>
    %cst = arith.constant 9.250000e-01 : f32
    %cst_5 = arith.constant 2.500000e-02 : f32
    %7 = vector.broadcast %cst : f32 to vector<4x256xf32>
    %8 = vector.broadcast %cst_5 : f32 to vector<4x256xf32>
    %9 = arith.select %6, %7, %8 : vector<4x256xi1>, vector<4x256xf32>
    %c0_6 = arith.constant 0 : index
    %c0_7 = arith.constant 0 : index
    %c0_8 = arith.constant 0 : index
    %10 = vector.load %arg4[%c0_6, %c0_7, %c0_8] : memref<1x4x256xf32, #tpu.memory_space<vmem>>, vector<1x4x256xf32>
    %11 = vector.shape_cast %10 : vector<1x4x256xf32> to vector<4x256xf32>
    %12 = vector.shape_cast %9 : vector<4x256xf32> to vector<1x4x256xf32>
    tpu.vector_store %arg4[%c0_6, %c0_7, %c0_8], %12 {strides = array<i32>} : memref<1x4x256xf32, #tpu.memory_space<vmem>>, vector<1x4x256xf32>,
    %cst_9 = arith.constant dense<0xFF800000> : vector<256xf32>
    %13 = vector.multi_reduction <maximumf>, %1, %cst_9 [0] : vector<4x256xf32> to vector<256xf32>
    %14 = vector.shape_cast %13 : vector<256xf32> to vector<1x256xf32>
    %15 = vector.broadcast %14 : vector<1x256xf32> to vector<4x256xf32>
    %16 = arith.subf %1, %15 : vector<4x256xf32>
    %17 = math.exp %16 : vector<4x256xf32>
    %cst_10 = arith.constant dense<0.000000e+00> : vector<256xf32>
    %18 = vector.multi_reduction <add>, %17, %cst_10 [0] : vector<4x256xf32> to vector<256xf32>
    %19 = vector.shape_cast %18 : vector<256xf32> to vector<1x256xf32>
    %20 = math.log %19 : vector<1x256xf32>
    %21 = arith.mulf %9, %16 : vector<4x256xf32>
    %cst_11 = arith.constant dense<0.000000e+00> : vector<256xf32>
    %22 = vector.multi_reduction <add>, %21, %cst_11 [0] : vector<4x256xf32> to vector<256xf32>
    %23 = vector.shape_cast %22 : vector<256xf32> to vector<1x256xf32>
    %cst_12 = arith.constant dense<0.000000e+00> : vector<256xf32>
    %24 = vector.multi_reduction <add>, %9, %cst_12 [0] : vector<4x256xf32> to vector<256xf32>
    %25 = vector.shape_cast %24 : vector<256xf32> to vector<1x256xf32>
    %c256_i32 = arith.constant 256 : i32
    %26 = arith.muli %arg1, %c256_i32 : i32
    %27 = tpu.iota {dimensions = array<i32: 1>} : vector<1x256xi32>
    %28 = vector.broadcast %26 : i32 to vector<1x256xi32>
    %29 = arith.addi %27, %28 : vector<1x256xi32>
    %c256_i32_13 = arith.constant 256 : i32
    %30 = vector.broadcast %c256_i32_13 : i32 to vector<1x256xi32>
    %31 = arith.cmpi slt, %29, %30 : vector<1x256xi32>
    %32 = arith.mulf %25, %20 : vector<1x256xf32>
    %33 = arith.subf %32, %23 : vector<1x256xf32>
    %cst_14 = arith.constant 0.000000e+00 : f32
    %34 = vector.broadcast %cst_14 : f32 to vector<1x256xf32>
    %35 = arith.select %31, %33, %34 : vector<1x256xi1>, vector<1x256xf32>
    %36 = vector.shape_cast %35 : vector<1x256xf32> to vector<1x1x256xf32>
    %cst_15 = arith.constant dense<0.000000e+00> : vector<1xf32>
    %37 = vector.multi_reduction <add>, %36, %cst_15 [1, 2] : vector<1x1x256xf32> to vector<1xf32>
    %38 = vector.shape_cast %37 : vector<1xf32> to vector<1x1x1xf32>
    %39 = vector.extract %38[0, 0, 0] : f32 from vector<1x1x1xf32>
    %40 = vector.broadcast %39 : f32 to vector<8x128xf32>
    %c0_16 = arith.constant 0 : index
    %c0_17 = arith.constant 0 : index
    %c0_18 = arith.constant 0 : index
    %c0_19 = arith.constant 0 : index
    %41 = vector.load %arg5[%c0_16, %c0_17, %c0_18, %c0_19] : memref<1x1x8x128xf32, #tpu.memory_space<vmem>>, vector<1x1x8x128xf32>
    %42 = vector.shape_cast %41 : vector<1x1x8x128xf32> to vector<8x128xf32>
    %43 = vector.shape_cast %40 : vector<8x128xf32> to vector<1x1x8x128xf32>
    tpu.vector_store %arg5[%c0_16, %c0_17, %c0_18, %c0_19], %43 {strides = array<i32>} : memref<1x1x8x128xf32, #tpu.memory_space<vmem>>, vector<1x1x8x128xf32>,
    return
  }
  func.func @transform_0(%arg0: i32, %arg1: i32) -> (i32, i32, i32) {
    %c0_i32 = arith.constant 0 : i32
    %c0_i32_0 = arith.constant 0 : i32
    return %arg0, %c0_i32, %arg1 : i32, i32, i32
  }
  func.func @transform_1(%arg0: i32, %arg1: i32) -> (i32, i32, i32) {
    %c0_i32 = arith.constant 0 : i32
    %c0_i32_0 = arith.constant 0 : i32
    return %arg0, %c0_i32, %arg1 : i32, i32, i32
  }
  func.func @transform_2(%arg0: i32, %arg1: i32) -> (i32, i32, i32) {
    %c0_i32 = arith.constant 0 : i32
    %c0_i32_0 = arith.constant 0 : i32
    return %arg0, %c0_i32, %arg1 : i32, i32, i32
  }
  func.func @transform_3(%arg0: i32, %arg1: i32) -> (i32, i32, i32, i32) {
    %c0_i32 = arith.constant 0 : i32
    %c0_i32_0 = arith.constant 0 : i32
    %c0_i32_1 = arith.constant 0 : i32
    return %arg0, %arg1, %c0_i32, %c0_i32_0 : i32, i32, i32, i32
  }
}

</mosaic_0001>

<llo_original>
// kernel: tpu_custom_call.1
$region0: #{tpu_custom_call.1}
  #allocation0 [shape = 'u32[]', space=smem, size = 0x4, offset = 0x4, fixed_abs, tag = 'smem constant byte address 0x4 - core index']
  #allocation1 [shape = 'u32[144,128]{1,0:T(1,128)}', space=vmem, size = 0x12000, scoped, tag = 'internal scratch']
  %s0 = inlined_call_operand.hbm [shape: f32[2,4,256], index: 0, kind: input, shape index: {}]
  %s1 = inlined_call_operand.hbm [shape: s32[2,1,256], index: 1, kind: input, shape index: {}]
  %s2 = inlined_call_operand.hbm [shape: f32[2,4,256], index: 2, kind: output, shape index: {0}]
  %s3 = inlined_call_operand.hbm [shape: f32[2,1,8,128], index: 3, kind: output, shape index: {1}]
  %4 = xla_tuple %s2, %s3
  %s5 = sld [smem:[#allocation0]]
  $region57: #{tpu_custom_call.1} parent=0
    _
  %s7 = ssub.s32 1, %s5
  %s8 = scalar_select 0, %s7, %s5
  $region1: #{tpu_custom_call.1} parent=0
    #allocation2 [shape = 'u8[8192]{0}', space=vmem, size = 0x2000, scoped, tag = 'input window, operand 0']
    #allocation3 [shape = 's32[2]{0}', space=sflag, size = 0x8, scoped, tag = 'scoped memory for tpu_custom_call.1']
    #allocation4 [shape = 's32[2]{0}', space=sflag, size = 0x8, scoped, tag = 'scoped memory for tpu_custom_call.1']
    #allocation5 [shape = 'u8[2048]{0}', space=vmem, size = 0x800, scoped, tag = 'input window, operand 1']
    #allocation6 [shape = 's32[2]{0}', space=sflag, size = 0x8, scoped, tag = 'scoped memory for tpu_custom_call.1']
    #allocation7 [shape = 'u8[8192]{0}', space=vmem, size = 0x2000, scoped, tag = 'output window, operand 0']
    #allocation8 [shape = 'u8[8192]{0}', space=vmem, size = 0x2000, scoped, tag = 'output window, operand 1']
    #allocation9 [shape = 's32[2]{0}', space=sflag, size = 0x8, scoped, tag = 'scoped memory for tpu_custom_call.1']
    %9 = vsyncpa [#allocation3], 0
    %s10 = scalar_lea.sflag [#allocation3], 1
    %11 = vsyncpa %s10, 0
    %12 = vsyncpa [#allocation6], 0
    %s13 = scalar_lea.sflag [#allocation6], 1
    %14 = vsyncpa %s13, 0
    %15 = vsyncpa [#allocation4], 0
    %s16 = scalar_lea.sflag [#allocation4], 1
    %17 = vsyncpa %s16, 0
    %18 = vsyncpa [#allocation9], 0
    %s19 = scalar_lea.sflag [#allocation9], 1
    %20 = vsyncpa %s19, 0
    loop: start=0, step=1, limit=4
    $region2: #{tpu_custom_call.1} parent=1 // loop_pre_header
      _
    $region3: #{tpu_custom_call.1} parent=1 // loop_header
      %s22 = sphi 0, %s26
      %p23 = scmp.ge.s32.totalorder %s22, 4
      %s29 = sphi 0, %s41
      %s30 = sphi 0, %s37
      %s31 = sphi 0, %s29
      %s32 = sphi 0, %s30
      %s33 = sphi 0, %s31
      %s34 = sphi 0, %s32
      %s46 = sphi 0, %s48
      %s49 = sphi 0, %s46
      %s50 = sphi 0, %s49
      %s66 = sphi 0, %s50
      %s74 = sphi 0, %s76
      %s77 = sphi 0, %s74
      %s78 = sphi 0, %s77
      %s94 = sphi 0, %s78
      %s102 = sphi 0, %s104
      %s105 = sphi 0, %s102
      %s106 = sphi 0, %s105
      %s122 = sphi 0, %s106
      %s130 = sphi 0, %s132
      %s133 = sphi 0, %s130
      %s134 = sphi 0, %s133
      %s150 = sphi 0, %s134
    $region4: #{tpu_custom_call.1} parent=1 // loop_header_branch
      %25 = sbr.rel (%p23) target = $region8
    $region5: #{tpu_custom_call.1} parent=1 // loop_body
      %s27 = ssub.s32 %s22, 1
      %s28 = ssub.s32 %s22, 2
      %s35 = sadd.s32 1, %s30
      %p36 = scmp.ge.s32.totalorder %s35, 1
      %s37 = scalar_select %p36, 0, %s35
      %s38 = sadd.s32 1, %s29
      %s39 = scalar_select %p36, %s38, %s29
      %p40 = scmp.ge.s32.totalorder %s39, 2
      %s41 = scalar_select %p40, 0, %s39
      %s42 = ssub.s32 %s29, %s41
      %s43 = ssub.s32 %s30, %s37
      %s44 = sor.u32 %s42, %s43
      %p45 = scmp.eq.s32.totalorder %s44, 0
      %s47 = sadd.s32 %s46, 1
      %s48 = scalar_select %p45, %s46, %s47
      %p51 = pneg %p45
      %p52 = scmp.eq.s32.totalorder %s22, 1
      %p53 = por %p51, %p52
      %p54 = scmp.ne.s32.totalorder %s46, %s49
      %p55 = scmp.eq.s32.totalorder %s22, 0
      %p56 = por %p54, %p55
      %p57 = scmp.ne.s32.totalorder %s46, %s49
      %p58 = scmp.eq.s32.totalorder %s27, 1
      %p59 = por %p57, %p58
      %p60 = scmp.ne.s32.totalorder %s49, %s50
      %p61 = scmp.eq.s32.totalorder %s27, 0
      %p62 = por %p60, %p61
      %p63 = scmp.ne.s32.totalorder %s49, %s50
      %p64 = scmp.eq.s32.totalorder %s28, 1
      %p65 = por %p63, %p64
      %p67 = scmp.ne.s32.totalorder %s50, %s66
      %p68 = scmp.eq.s32.totalorder %s28, 0
      %p69 = por %p67, %p68
      %s70 = ssub.s32 %s29, %s41
      %s71 = ssub.s32 %s30, %s37
      %s72 = sor.u32 %s70, %s71
      %p73 = scmp.eq.s32.totalorder %s72, 0
      %s75 = sadd.s32 %s74, 1
      %s76 = scalar_select %p73, %s74, %s75
      %p79 = pneg %p73
      %p80 = scmp.eq.s32.totalorder %s22, 1
      %p81 = por %p79, %p80
      %p82 = scmp.ne.s32.totalorder %s74, %s77
      %p83 = scmp.eq.s32.totalorder %s22, 0
      %p84 = por %p82, %p83
      %p85 = scmp.ne.s32.totalorder %s74, %s77
      %p86 = scmp.eq.s32.totalorder %s27, 1
      %p87 = por %p85, %p86
      %p88 = scmp.ne.s32.totalorder %s77, %s78
      %p89 = scmp.eq.s32.totalorder %s27, 0
      %p90 = por %p88, %p89
      %p91 = scmp.ne.s32.totalorder %s77, %s78
      %p92 = scmp.eq.s32.totalorder %s28, 1
      %p93 = por %p91, %p92
      %p95 = scmp.ne.s32.totalorder %s78, %s94
      %p96 = scmp.eq.s32.totalorder %s28, 0
      %p97 = por %p95, %p96
      %s98 = ssub.s32 %s29, %s41
      %s99 = ssub.s32 %s30, %s37
      %s100 = sor.u32 %s98, %s99
      %p101 = scmp.eq.s32.totalorder %s100, 0
      %s103 = sadd.s32 %s102, 1
      %s104 = scalar_select %p101, %s102, %s103
      %p107 = pneg %p101
      %p108 = scmp.eq.s32.totalorder %s22, 1
      %p109 = por %p107, %p108
      %p110 = scmp.ne.s32.totalorder %s102, %s105
      %p111 = scmp.eq.s32.totalorder %s22, 0
      %p112 = por %p110, %p111
      %p113 = scmp.ne.s32.totalorder %s102, %s105
      %p114 = scmp.eq.s32.totalorder %s27, 1
      %p115 = por %p113, %p114
      %p116 = scmp.ne.s32.totalorder %s105, %s106
      %p117 = scmp.eq.s32.totalorder %s27, 0
      %p118 = por %p116, %p117
      %p119 = scmp.ne.s32.totalorder %s105, %s106
      %p120 = scmp.eq.s32.totalorder %s28, 1
      %p121 = por %p119, %p120
      %p123 = scmp.ne.s32.totalorder %s106, %s122
      %p124 = scmp.eq.s32.totalorder %s28, 0
      %p125 = por %p123, %p124
      %s126 = ssub.s32 %s29, %s41
      %s127 = ssub.s32 %s30, %s37
      %s128 = sor.u32 %s126, %s127
      %p129 = scmp.eq.s32.totalorder %s128, 0
      %s131 = sadd.s32 %s130, 1
      %s132 = scalar_select %p129, %s130, %s131
      %p135 = pneg %p129
      %p136 = scmp.eq.s32.totalorder %s22, 1
      %p137 = por %p135, %p136
      %p138 = scmp.ne.s32.totalorder %s130, %s133
      %p139 = scmp.eq.s32.totalorder %s22, 0
      %p140 = por %p138, %p139
      %p141 = scmp.ne.s32.totalorder %s130, %s133
      %p142 = scmp.eq.s32.totalorder %s27, 1
      %p143 = por %p141, %p142
      %p144 = scmp.ne.s32.totalorder %s133, %s134
      %p145 = scmp.eq.s32.totalorder %s27, 0
      %p146 = por %p144, %p145
      %p147 = scmp.ne.s32.totalorder %s133, %s134
      %p148 = scmp.eq.s32.totalorder %s28, 1
      %p149 = por %p147, %p148
      %p151 = scmp.ne.s32.totalorder %s134, %s150
      %p152 = scmp.eq.s32.totalorder %s28, 0
      %p153 = por %p151, %p152
      %p154 = scmp.le.s32.totalorder 1, %s22
      %p155 = scmp.lt.s32.totalorder %s22, 3
      %p156 = pnand %p154, %p155
      %p157 = pneg %p156
      // Predicated region
      $region9: #{tpu_custom_call.1} parent=5 // pred_check
        _
      $region10: #{tpu_custom_call.1} parent=5 // pred_check_branch
        %159 = sbr.rel (%p156) target = $region12
      $region11: #{tpu_custom_call.1} parent=5 // pred_region
        %s160 = ssub.s32 %s22, 1
      $region12: #{tpu_custom_call.1} parent=5 // pred_fallthru
        _
      %p161 = scmp.lt.s32.totalorder %s22, 2
      // Predicated region
      $region13: #{tpu_custom_call.1} parent=5 // pred_check
        %p162 = pneg %p161
      $region14: #{tpu_custom_call.1} parent=5 // pred_check_branch
        %164 = sbr.rel (%p162) target = $region16
      $region15: #{tpu_custom_call.1} parent=5 // pred_region
        // Predicated region
        $region17: #{tpu_custom_call.1} parent=15 // pred_check
          %p165 = pneg %p56
        $region18: #{tpu_custom_call.1} parent=15 // pred_check_branch
          %167 = sbr.rel (%p165) target = $region20
        $region19: #{tpu_custom_call.1} parent=15 // pred_region
          %s168 = sand.u32 %s46, 1
          %s169 = scalar_lea.sflag [#allocation3], %s168
          %s170 = sand.u32 %s46, 1
          %s171 = smul.addr %s170, 8
          %s172 = scalar_lea.vmem [#allocation2], %s171
          %s173 = smul.u32 2, %s30
          %s175 = ssub.s32 128, 128
          %176 = vsyncadd %s169, %s175
          %s177 = smul.addr %s29, 2
          %s178 = sadd.s32 %s173, %s177
          %s179 = smul.addr %s178, 64
          %s180 = scalar_lea.hbm %s0, %s179
          %s182 = sshll.u32 %s172, 4
          %s183 = int_to_ptr.vmem [resolvable:$true] %s182
          %185 = dma.hbm_to_vmem [thread:$0]  %s180, 128, %s183, %s169
        $region20: #{tpu_custom_call.1} parent=15 // pred_fallthru
          _
        // Predicated region
        $region21: #{tpu_custom_call.1} parent=15 // pred_check
          %p186 = pneg %p84
        $region22: #{tpu_custom_call.1} parent=15 // pred_check_branch
          %188 = sbr.rel (%p186) target = $region24
        $region23: #{tpu_custom_call.1} parent=15 // pred_region
          %s189 = sand.u32 %s74, 1
          %s190 = scalar_lea.sflag [#allocation6], %s189
          %s191 = sand.u32 %s74, 1
          %s192 = smul.addr %s191, 2
          %s193 = scalar_lea.vmem [#allocation5], %s192
          %s194 = smul.u32 2, %s30
          %s196 = ssub.s32 32, 32
          %197 = vsyncadd %s190, %s196
          %s198 = smul.addr %s29, 2
          %s199 = sadd.s32 %s194, %s198
          %s200 = smul.addr %s199, 16
          %s201 = scalar_lea.hbm %s1, %s200
          %s203 = sshll.u32 %s193, 4
          %s204 = int_to_ptr.vmem [resolvable:$true] %s203
          %206 = dma.hbm_to_vmem [thread:$0]  %s201, 32, %s204, %s190
        $region24: #{tpu_custom_call.1} parent=15 // pred_fallthru
          _
      $region16: #{tpu_custom_call.1} parent=5 // pred_fallthru
        _
      %p207 = scmp.le.s32.totalorder 1, %s22
      %p208 = scmp.lt.s32.totalorder %s22, 3
      %p209 = pnand %p207, %p208
      %p210 = pneg %p209
      // Predicated region
      $region25: #{tpu_custom_call.1} parent=5 // pred_check
        _
      $region26: #{tpu_custom_call.1} parent=5 // pred_check_branch
        %212 = sbr.rel (%p209) target = $region28
      $region27: #{tpu_custom_call.1} parent=5 // pred_region
        %s213 = ssub.s32 %s22, 1
        %s214 = sand.u32 %s49, 1
        %s215 = scalar_lea.sflag [#allocation3], %s214
        %s216 = sand.u32 %s49, 1
        %s217 = smul.addr %s216, 8
        %s218 = scalar_lea.vmem [#allocation2], %s217
        // Predicated region
        $region29: #{tpu_custom_call.1} parent=27 // pred_check
          %p219 = pneg %p62
        $region30: #{tpu_custom_call.1} parent=27 // pred_check_branch
          %221 = sbr.rel (%p219) target = $region32
        $region31: #{tpu_custom_call.1} parent=27 // pred_region
          %222 = dma.done %s215, 128
        $region32: #{tpu_custom_call.1} parent=27 // pred_fallthru
          _
        %s223 = sand.u32 %s77, 1
        %s224 = scalar_lea.sflag [#allocation6], %s223
        %s225 = sand.u32 %s77, 1
        %s226 = smul.addr %s225, 2
        %s227 = scalar_lea.vmem [#allocation5], %s226
        // Predicated region
        $region33: #{tpu_custom_call.1} parent=27 // pred_check
          %p228 = pneg %p90
        $region34: #{tpu_custom_call.1} parent=27 // pred_check_branch
          %230 = sbr.rel (%p228) target = $region36
        $region35: #{tpu_custom_call.1} parent=27 // pred_region
          %231 = dma.done %s224, 32
        $region36: #{tpu_custom_call.1} parent=27 // pred_fallthru
          _
        %s232 = sand.u32 %s49, 1
        %s233 = scalar_lea.sflag [#allocation3], %s232
        %s234 = sand.u32 %s49, 1
        %s235 = smul.addr %s234, 8
        %s236 = scalar_lea.vmem [#allocation2], %s235
        %p237 = pneg %p62
        %p238 = pneg %p59
        %s239 = sand.u32 %s77, 1
        %s240 = scalar_lea.sflag [#allocation6], %s239
        %s241 = sand.u32 %s77, 1
        %s242 = smul.addr %s241, 2
        %s243 = scalar_lea.vmem [#allocation5], %s242
        %p244 = pneg %p90
        %p245 = pneg %p87
        %p246 = pneg %p118
        %p247 = pneg %p115
        %s248 = sand.u32 %s105, 1
        %s249 = scalar_lea.sflag [#allocation4], %s248
        %s250 = sand.u32 %s105, 1
        %s251 = smul.addr %s250, 8
        %s252 = scalar_lea.vmem [#allocation7], %s251
        %p253 = pneg %p146
        %p254 = pneg %p143
        %s255 = sand.u32 %s133, 1
        %s256 = scalar_lea.sflag [#allocation9], %s255
        %s257 = sand.u32 %s133, 1
        %s258 = smul.addr %s257, 8
        %s259 = scalar_lea.vmem [#allocation8], %s258
        %s260 = smul.u32 2, %s32
        %s261 = smul.u32 2, %s32
        %s262 = smul.u32 2, %s32
        %v263 = vld [vmem:[%s218] sm:$0xff]
        %v264 = vld [vmem:[%s227] sm:$0x3]
        %v265 = vlaneseq
        %v266 = vshrl.u32 %v265, 7
        %v267 = vlaneseq
        %v268 = vshrl.u32 %v267, 7
        %v269 = vsub.s32 0, %v268
        %v270 = vrot.slane %v264, %v269
        %v271 = vlaneseq
        %v272 = vshrl.u32 %v271, 7
        %v273 = vsub.s32 1, %v272
        %v274 = vrot.slane %v264, %v273
        %vm275 = vcmp.eq.s32.totalorder %v266, %v270
        %vm276 = vcmp.eq.s32.totalorder %v266, %v274
        %v277 = vsel %vm275, 0.925, 0.025
        %v278 = vsel %vm276, 0.925, 0.025
        %v281 = vcombine.low %v277, %v278
        %283 = vst [vmem:[%s252] sm:$0xff] %v281
        %v285 = vcombine.high %v263, %v263
        %vm287 = vcmask 1043456
        %v288 = vsel %vm287, %v263, -inf
        %v289 = vrot.slane %v288, 4
        %v290 = vmax.f32 %v288, %v289
        %v291 = vrot.slane %v290, 2
        %v292 = vmax.f32 %v290, %v291
        %v293 = vrot.slane %v292, 1
        %v294 = vmax.f32 %v292, %v293
        %v295 = vsel %vm287, %v285, -inf
        %v296 = vrot.slane %v295, 4
        %v297 = vmax.f32 %v295, %v296
        %v298 = vrot.slane %v297, 2
        %v299 = vmax.f32 %v297, %v298
        %v300 = vrot.slane %v299, 1
        %v301 = vmax.f32 %v299, %v300
        %v304 = vcombine.low %v294, %v301
        %v306 = vsub.f32 %v263, %v304
        %v307 = vmul.f32 %v306, 1.442695
        %v308 = vpow.pop %v307
        %v310 = vcombine.high %v308, %v308
        %v312 = vsel %vm287, %v308, 0.0
        %v313 = vrot.slane %v312, 4
        %v314 = vadd.f32 %v312, %v313
        %v315 = vrot.slane %v314, 2
        %v316 = vadd.f32 %v314, %v315
        %v317 = vrot.slane %v316, 1
        %v318 = vadd.f32 %v316, %v317
        %v319 = vsel %vm287, %v310, 0.0
        %v320 = vrot.slane %v319, 4
        %v321 = vadd.f32 %v319, %v320
        %v322 = vrot.slane %v321, 2
        %v323 = vadd.f32 %v321, %v322
        %v324 = vrot.slane %v323, 1
        %v325 = vadd.f32 %v323, %v324
        %v326 = vlog2.pop %v318
        %v327 = vmul.f32 %v326, 0.6931472
        %v328 = vlog2.pop %v325
        %v329 = vmul.f32 %v328, 0.6931472
        %v331 = vcombine.high %v306, %v306
        %v333 = vmul.f32 %v277, %v306
        %v334 = vmul.f32 %v278, %v331
        %v335 = vsel %vm287, %v333, 0.0
        %v336 = vrot.slane %v335, 4
        %v337 = vadd.f32 %v335, %v336
        %v338 = vrot.slane %v337, 2
        %v339 = vadd.f32 %v337, %v338
        %v340 = vrot.slane %v339, 1
        %v341 = vadd.f32 %v339, %v340
        %v342 = vsel %vm287, %v334, 0.0
        %v343 = vrot.slane %v342, 4
        %v344 = vadd.f32 %v342, %v343
        %v345 = vrot.slane %v344, 2
        %v346 = vadd.f32 %v344, %v345
        %v347 = vrot.slane %v346, 1
        %v348 = vadd.f32 %v346, %v347
        %v349 = vsel %vm287, %v277, 0.0
        %v350 = vrot.slane %v349, 4
        %v351 = vadd.f32 %v349, %v350
        %v352 = vrot.slane %v351, 2
        %v353 = vadd.f32 %v351, %v352
        %v354 = vrot.slane %v353, 1
        %v355 = vadd.f32 %v353, %v354
        %v356 = vsel %vm287, %v278, 0.0
        %v357 = vrot.slane %v356, 4
        %v358 = vadd.f32 %v356, %v357
        %v359 = vrot.slane %v358, 2
        %v360 = vadd.f32 %v358, %v359
        %v361 = vrot.slane %v360, 1
        %v362 = vadd.f32 %v360, %v361
        %s363 = smul.u32 %s32, 256
        %v364 = vlaneseq
        %v365 = vand.u32 %v364, 127
        %v366 = vadd.s32 %v365, 128
        %v367 = vstv %s363
        %v368 = vadd.s32 %v365, %v367
        %v369 = vadd.s32 %v366, %v367
        %vm370 = vcmp.lt.s32.totalorder %v368, 256
        %vm371 = vcmp.lt.s32.totalorder %v369, 256
        %v372 = vmul.f32 %v355, %v327
        %v373 = vmul.f32 %v362, %v329
        %v374 = vsub.f32 %v372, %v341
        %v375 = vsub.f32 %v373, %v348
        %v376 = vsel %vm370, %v374, 0.0
        %v377 = vsel %vm371, %v375, 0.0
        %vm378 = vcmask 1040384
        %v379 = vsel %vm378, %v376, 0.0
        %v380 = vsel %vm378, %v377, 0.0
        %v381 = vadd.f32 %v379, %v380
        %382 = vadd.xlane.f32.xlu0 %v381
        %v383 = vpop.xlane.xlu0 %382
        %v384 = vrot.slane %v383, 4
        %v385 = vadd.f32 %v383, %v384
        %v386 = vrot.slane %v385, 2
        %v387 = vadd.f32 %v385, %v386
        %v388 = vrot.slane %v387, 1
        %v389 = vadd.f32 %v387, %v388
        %s390 = vtos %v389
        %v391 = vstv %s390
        %392 = vst [vmem:[%s259] sm:$0xff] %v391
        %s393 = sand.u32 %s105, 1
        %s394 = scalar_lea.sflag [#allocation4], %s393
        %s395 = sand.u32 %s105, 1
        %s396 = smul.addr %s395, 8
        %s397 = scalar_lea.vmem [#allocation7], %s396
        %s398 = sand.u32 %s133, 1
        %s399 = scalar_lea.sflag [#allocation9], %s398
        %s400 = sand.u32 %s133, 1
        %s401 = smul.addr %s400, 8
        %s402 = scalar_lea.vmem [#allocation8], %s401
        // Predicated region
        $region37: #{tpu_custom_call.1} parent=27 // pred_check
          %p403 = pneg %p115
        $region38: #{tpu_custom_call.1} parent=27 // pred_check_branch
          %405 = sbr.rel (%p403) target = $region40
        $region39: #{tpu_custom_call.1} parent=27 // pred_region
          %s406 = smul.u32 2, %s32
          %s408 = ssub.s32 128, 128
          %409 = vsyncadd %s394, %s408
          %s410 = smul.addr %s31, 2
          %s411 = sadd.s32 %s406, %s410
          %s412 = smul.addr %s411, 64
          %s413 = scalar_lea.hbm %s2, %s412
          %s415 = sshll.u32 %s397, 4
          %s416 = int_to_ptr.vmem [resolvable:$true] %s415
          %418 = dma.vmem_to_hbm [thread:$0]  %s416, 128, %s413, %s394
        $region40: #{tpu_custom_call.1} parent=27 // pred_fallthru
          _
        // Predicated region
        $region41: #{tpu_custom_call.1} parent=27 // pred_check
          %p419 = pneg %p143
        $region42: #{tpu_custom_call.1} parent=27 // pred_check_branch
          %421 = sbr.rel (%p419) target = $region44
        $region43: #{tpu_custom_call.1} parent=27 // pred_region
          %s423 = ssub.s32 128, 128
          %424 = vsyncadd %s399, %s423
          %s425 = sadd.s32 %s32, %s31
          %s426 = smul.addr %s425, 128
          %s427 = scalar_lea.hbm %s3, %s426
          %s429 = sshll.u32 %s402, 4
          %s430 = int_to_ptr.vmem [resolvable:$true] %s429
          %432 = dma.vmem_to_hbm [thread:$0]  %s430, 128, %s427, %s399
        $region44: #{tpu_custom_call.1} parent=27 // pred_fallthru
          _
      $region28: #{tpu_custom_call.1} parent=5 // pred_fallthru
        _
      %p433 = scmp.le.s32.totalorder 2, %s22
      // Predicated region
      $region45: #{tpu_custom_call.1} parent=5 // pred_check
        %p434 = pneg %p433
      $region46: #{tpu_custom_call.1} parent=5 // pred_check_branch
        %436 = sbr.rel (%p434) target = $region48
      $region47: #{tpu_custom_call.1} parent=5 // pred_region
        %s437 = ssub.s32 %s22, 2
        // Predicated region
        $region49: #{tpu_custom_call.1} parent=47 // pred_check
          %p438 = pneg %p121
        $region50: #{tpu_custom_call.1} parent=47 // pred_check_branch
          %440 = sbr.rel (%p438) target = $region52
        $region51: #{tpu_custom_call.1} parent=47 // pred_region
          %s441 = sand.u32 %s106, 1
          %s442 = scalar_lea.sflag [#allocation4], %s441
          %s443 = sand.u32 %s106, 1
          %s444 = smul.addr %s443, 8
          %s445 = scalar_lea.vmem [#allocation7], %s444
          %446 = dma.done %s442, 128
        $region52: #{tpu_custom_call.1} parent=47 // pred_fallthru
          _
        // Predicated region
        $region53: #{tpu_custom_call.1} parent=47 // pred_check
          %p447 = pneg %p149
        $region54: #{tpu_custom_call.1} parent=47 // pred_check_branch
          %449 = sbr.rel (%p447) target = $region56
        $region55: #{tpu_custom_call.1} parent=47 // pred_region
          %s450 = sand.u32 %s134, 1
          %s451 = scalar_lea.sflag [#allocation9], %s450
          %s452 = sand.u32 %s134, 1
          %s453 = smul.addr %s452, 8
          %s454 = scalar_lea.vmem [#allocation8], %s453
          %455 = dma.done %s451, 128
        $region56: #{tpu_custom_call.1} parent=47 // pred_fallthru
          _
      $region48: #{tpu_custom_call.1} parent=5 // pred_fallthru
        _
    $region6: #{tpu_custom_call.1} parent=1 // loop_footer
      %s26 = sadd.s32 1, %s22
    $region7: #{tpu_custom_call.1} parent=1 // loop_footer_branch
      %21 = sbr.rel target = $region3
    $region8: #{tpu_custom_call.1} parent=1 // loop_exit
      _
    %456 = vsyncpa [#allocation3], 1
    %s457 = scalar_lea.sflag [#allocation3], 1
    %458 = vsyncpa %s457, 1
    %459 = vsyncpa [#allocation6], 1
    %s460 = scalar_lea.sflag [#allocation6], 1
    %461 = vsyncpa %s460, 1
    %462 = vsyncpa [#allocation4], 1
    %s463 = scalar_lea.sflag [#allocation4], 1
    %464 = vsyncpa %s463, 1
    %465 = vsyncpa [#allocation9], 1
    %s466 = scalar_lea.sflag [#allocation9], 1
    %467 = vsyncpa %s466, 1

</llo_original>
